<compile_context>
chip_gen: v7x
topology: tpu7x:2x2x1
jax: 0.10.0
libtpu: 0.0.40
codegen_flags: <defaults>
</compile_context>

<pallas_src>
import jax
import jax.numpy as jnp
from jax.experimental import pallas as pl
from jax.experimental.pallas import tpu as pltpu

H, W, C = 4, 4, 4
B = 1                            # reference module only supports batch=1
D = 2 * H * W * C                # input_dim = 128
NUM_EXPERTS = 4                  # per branch
NUM_TOTAL = 2 * NUM_EXPERTS      # 8 experts total (0..3 rgb, 4..7 ir)
TOP_K = 2
NE_COLS = NUM_TOTAL * D          # 1024 expert output columns
NP = 1152                        # packed RHS width (1024 experts + 8 gate + pad)


# ------------------------------ fused kernel --------------------------------

def gate_moe_kernel(x_ref, w_ref, b_ref, out_ref, idx_ref):
    x = x_ref[...]                                   # (1, D) f32
    xb = x.astype(jnp.bfloat16)

    # One wide matmul: experts AND gate in a single weight push.
    # y[:, e*D:(e+1)*D] = x @ W_e + b_e   (e = 0..7)
    # y[:, 1024:1032]   = x @ Wg + bg     (gate scores, pre-ReLU)
    y = jnp.dot(xb, w_ref[...], preferred_element_type=jnp.float32)
    y = y + b_ref[...]                               # (1, NP) f32

    # ---- gate scores: last 128-lane chunk holds the 8 scores in lanes 0..7
    g = jnp.maximum(y[:, NE_COLS:NE_COLS + D], 0.0)  # (1, 128), ReLU'd
    lane = jax.lax.broadcasted_iota(jnp.int32, (1, D), 1)
    neg_inf = jnp.float32(-jnp.inf)

    def score(k):                                    # lane k -> (1, 1)
        return jnp.max(jnp.where(lane == k, g, neg_inf), axis=1, keepdims=True)

    s = [score(k) for k in range(NUM_TOTAL)]

    # per-branch, per-half top-1 (ties -> lower index, like torch.topk/argmax)
    r1_even = s[0] >= s[1]
    v_r1 = jnp.maximum(s[0], s[1])
    r2_even = s[2] >= s[3]
    v_r2 = jnp.maximum(s[2], s[3])
    i1_even = s[4] >= s[5]
    v_i1 = jnp.maximum(s[4], s[5])
    i2_even = s[6] >= s[7]
    v_i2 = jnp.maximum(s[6], s[7])

    # exact 2-way softmax per branch on (1,1) values
    m_r = jnp.maximum(v_r1, v_r2)
    e_r1 = jnp.exp(v_r1 - m_r)
    e_r2 = jnp.exp(v_r2 - m_r)
    inv_r = 1.0 / (e_r1 + e_r2)
    p_r1 = e_r1 * inv_r
    p_r2 = e_r2 * inv_r

    m_i = jnp.maximum(v_i1, v_i2)
    e_i1 = jnp.exp(v_i1 - m_i)
    e_i2 = jnp.exp(v_i2 - m_i)
    inv_i = 1.0 / (e_i1 + e_i2)
    p_i1 = e_i1 * inv_i
    p_i2 = e_i2 * inv_i

    # ---- combine: pick the winning (vreg-aligned) 128-wide chunk per pair,
    #      scale by its broadcast prob, depth-2 tree add.
    def chunk(e):
        return y[:, e * D:(e + 1) * D]               # (1, 128), lane-aligned

    out_rgb = (p_r1 * jnp.where(r1_even, chunk(0), chunk(1))
               + p_r2 * jnp.where(r2_even, chunk(2), chunk(3)))
    out_ir = (p_i1 * jnp.where(i1_even, chunk(4), chunk(5))
              + p_i2 * jnp.where(i2_even, chunk(6), chunk(7)))
    out_ref[...] = (out_rgb + out_ir).astype(out_ref.dtype)

    # argmax over each branch's 2-way softmax == argmax over the pair maxima;
    # both indices packed into one (1, 2) int32 output.
    idx_rgb = jnp.where(v_r1 >= v_r2, 0, 1)          # (1, 1) int32
    idx_ir = jnp.where(v_i1 >= v_i2, 0, 1)           # (1, 1) int32
    lane2 = jax.lax.broadcasted_iota(jnp.int32, (1, 2), 1)
    idx_ref[...] = jnp.where(lane2 == 0, idx_rgb, idx_ir).astype(jnp.int32)


# -------------------------------- wrapper ------------------------------------

def gate_network_forward(params, rgb_local, ir_local):
    x = jnp.concatenate(
        [rgb_local.reshape(B, -1), ir_local.reshape(B, -1)], axis=1
    ).astype(jnp.float32)

    vmem = pl.BlockSpec(memory_space=pltpu.MemorySpace.VMEM)
    combined, idx = pl.pallas_call(
        gate_moe_kernel,
        out_shape=(
            jax.ShapeDtypeStruct((B, D), jnp.float32),
            jax.ShapeDtypeStruct((B, 2), jnp.int32),
        ),
        in_specs=[vmem, vmem, vmem],
        out_specs=(vmem, vmem),
    )(x, params["w_packed"], params["b_packed"])
    return combined, idx[:, 0], idx[:, 1]


# ------------------------- params + pure-JAX reference ----------------------

def init_params(key):
    ks = jax.random.split(key, 6)
    lim = 1.0 / jnp.sqrt(jnp.float32(D))
    wg_rgb = jax.random.uniform(ks[0], (D, NUM_EXPERTS), jnp.float32, -lim, lim)
    wg_ir = jax.random.uniform(ks[1], (D, NUM_EXPERTS), jnp.float32, -lim, lim)
    bg_rgb = jax.random.uniform(ks[2], (NUM_EXPERTS,), jnp.float32, -lim, lim)
    bg_ir = jax.random.uniform(ks[3], (NUM_EXPERTS,), jnp.float32, -lim, lim)
    # experts 0..3 = rgb branch, 4..7 = ir branch; W_e is (D_in, D_out)
    w_experts = jax.random.uniform(ks[4], (NUM_TOTAL, D, D), jnp.float32,
                                   -lim, lim)
    b_experts = jax.random.uniform(ks[5], (NUM_TOTAL, D), jnp.float32,
                                   -lim, lim)

    # pack one wide RHS: columns [e*D:(e+1)*D] = W_e, [1024:1032] = gate,
    # [1032:1152] = zeros (lane padding to a multiple of 128)
    w_wide = jnp.transpose(w_experts, (1, 0, 2)).reshape(D, NE_COLS)
    wg = jnp.concatenate([wg_rgb, wg_ir], axis=1)                  # (D, 8)
    w_pad = jnp.zeros((D, NP - NE_COLS - NUM_TOTAL), jnp.float32)
    w_packed = jnp.concatenate([w_wide, wg, w_pad], axis=1)        # (D, NP)

    b_wide = b_experts.reshape(1, NE_COLS)
    bg = jnp.concatenate([bg_rgb, bg_ir]).reshape(1, NUM_TOTAL)
    b_pad = jnp.zeros((1, NP - NE_COLS - NUM_TOTAL), jnp.float32)
    b_packed = jnp.concatenate([b_wide, bg, b_pad], axis=1)        # (1, NP)

    return {
        "w_packed": w_packed.astype(jnp.bfloat16),   # bf16 storage: half HBM
        "b_packed": b_packed.astype(jnp.float32),    # bias stays f32 (tiny)
    }


def pair_top1(scores):
    # top-1 over scores[:, :2] and over scores[:, 2:], like the module.
    v1 = jnp.max(scores[:, :2], axis=-1)
    i1 = jnp.argmax(scores[:, :2], axis=-1)
    v2 = jnp.max(scores[:, 2:4], axis=-1)
    i2 = jnp.argmax(scores[:, 2:4], axis=-1) + 2
    return (jnp.stack([v1, v2], axis=-1),
            jnp.stack([i1, i2], axis=-1).astype(jnp.int32))


def reference_forward(params, rgb_local, ir_local):
    # Models the kernel's numerics: bf16-rounded operands (same values the MXU
    # sees at default precision), f32 products/accumulation.
    x = jnp.concatenate(
        [rgb_local.reshape(B, -1), ir_local.reshape(B, -1)], axis=1)
    xq = x.astype(jnp.bfloat16).astype(jnp.float32)
    w = params["w_packed"].astype(jnp.float32)       # (D, NP)
    b = params["b_packed"]                           # (1, NP)

    wg = w[:, NE_COLS:NE_COLS + NUM_TOTAL]           # (D, 8)
    bg = b[:, NE_COLS:NE_COLS + NUM_TOTAL]           # (1, 8)
    scores = jnp.maximum(xq @ wg + bg, 0.0)
    s_rgb, s_ir = scores[:, :NUM_EXPERTS], scores[:, NUM_EXPERTS:]
    ts_rgb, ti_rgb = pair_top1(s_rgb)
    ts_ir, ti_ir = pair_top1(s_ir)
    p_rgb = jax.nn.softmax(ts_rgb, axis=-1)
    p_ir = jax.nn.softmax(ts_ir, axis=-1)

    def expert(e):                                   # global expert id 0..7
        w_e = jax.lax.dynamic_slice(w, (0, e * D), (D, D))
        b_e = jax.lax.dynamic_slice(b, (0, e * D), (1, D))
        return xq @ w_e + b_e

    out = jnp.zeros((B, D), jnp.float32)
    for i in range(TOP_K):
        out = out + p_rgb[:, i:i + 1] * expert(ti_rgb[0, i])
    for i in range(TOP_K):
        out = out + p_ir[:, i:i + 1] * expert(ti_ir[0, i] + NUM_EXPERTS)
    return out, jnp.argmax(p_rgb, axis=-1), jnp.argmax(p_ir, axis=-1)


# ----------------------------------- main ------------------------------------

if __name__ == "__main__":
    key = jax.random.PRNGKey(0)
    k_p, k_rgb, k_ir = jax.random.split(key, 3)
    params = init_params(k_p)
    rgb_local = jax.random.normal(k_rgb, (B, H, W, C), dtype=jnp.float32)
    ir_local = jax.random.normal(k_ir, (B, H, W, C), dtype=jnp.float32)

    fwd = jax.jit(gate_network_forward)
    combined, max_idx_rgb, max_idx_ir = fwd(params, rgb_local, ir_local)
    jax.block_until_ready(combined)

    ref_out, ref_idx_rgb, ref_idx_ir = reference_forward(
        params, rgb_local, ir_local)
    assert combined.shape == (B, D)
    max_err = float(jnp.max(jnp.abs(combined - ref_out)))
    assert jnp.allclose(combined, ref_out, atol=1e-4, rtol=1e-4), (
        "max abs err", max_err)
    assert bool(jnp.all(max_idx_rgb.astype(jnp.int32)
                        == ref_idx_rgb.astype(jnp.int32)))
    assert bool(jnp.all(max_idx_ir.astype(jnp.int32)
                        == ref_idx_ir.astype(jnp.int32)))
    print("KERNEL_OK")
</pallas_src>

<mosaic_0001>
module attributes {stable_mosaic.version = 11 : i64} {
  func.func @gate_moe_kernel(%arg0: memref<1x128xf32, #tpu.memory_space<vmem>>, %arg1: memref<128x1152xbf16, #tpu.memory_space<vmem>>, %arg2: memref<1x1152xf32, #tpu.memory_space<vmem>>, %arg3: memref<1x128xf32, #tpu.memory_space<vmem>>, %arg4: memref<1x2xi32, #tpu.memory_space<vmem>>) attributes {dimension_semantics = [], scalar_prefetch = 0 : i64, scratch_operands = 0 : i64, tpu.core_type = #tpu.core_type<tc>} {
    %c0 = arith.constant 0 : index
    %c0_0 = arith.constant 0 : index
    %0 = vector.load %arg0[%c0, %c0_0] : memref<1x128xf32, #tpu.memory_space<vmem>>, vector<1x128xf32>
    %1 = arith.truncf %0 : vector<1x128xf32> to vector<1x128xbf16>
    %c0_1 = arith.constant 0 : index
    %c0_2 = arith.constant 0 : index
    %2 = vector.load %arg1[%c0_1, %c0_2] : memref<128x1152xbf16, #tpu.memory_space<vmem>>, vector<128x1152xbf16>
    %cst = arith.constant dense<0.000000e+00> : vector<1x1152xf32>
    %3 = tpu.matmul %1, %2, %cst {dimension_numbers = #tpu.dot_dimension_numbers<[1], [0], [0], [1], [0, 0, 1, 1], [], []>} : vector<1x128xbf16>, vector<128x1152xbf16>, vector<1x1152xf32> -> vector<1x1152xf32>
    %c0_3 = arith.constant 0 : index
    %c0_4 = arith.constant 0 : index
    %4 = vector.load %arg2[%c0_3, %c0_4] : memref<1x1152xf32, #tpu.memory_space<vmem>>, vector<1x1152xf32>
    %5 = arith.addf %3, %4 : vector<1x1152xf32>
    %6 = vector.extract_strided_slice %5 {offsets = [0, 1024], sizes = [1, 128], strides = [1, 1]} : vector<1x1152xf32> to vector<1x128xf32>
    %cst_5 = arith.constant 0.000000e+00 : f32
    %7 = vector.broadcast %cst_5 : f32 to vector<1x128xf32>
    %8 = arith.maximumf %6, %7 : vector<1x128xf32>
    %9 = tpu.iota {dimensions = array<i32: 1>} : vector<1x128xi32>
    %c0_i32 = arith.constant 0 : i32
    %10 = vector.broadcast %c0_i32 : i32 to vector<1x128xi32>
    %11 = arith.cmpi eq, %9, %10 : vector<1x128xi32>
    %cst_6 = arith.constant 0xFF800000 : f32
    %12 = vector.broadcast %cst_6 : f32 to vector<1x128xf32>
    %13 = arith.select %11, %8, %12 : vector<1x128xi1>, vector<1x128xf32>
    %cst_7 = arith.constant dense<0xFF800000> : vector<1xf32>
    %14 = vector.multi_reduction <maximumf>, %13, %cst_7 [1] : vector<1x128xf32> to vector<1xf32>
    %15 = vector.shape_cast %14 : vector<1xf32> to vector<1x1xf32>
    %c1_i32 = arith.constant 1 : i32
    %16 = vector.broadcast %c1_i32 : i32 to vector<1x128xi32>
    %17 = arith.cmpi eq, %9, %16 : vector<1x128xi32>
    %cst_8 = arith.constant 0xFF800000 : f32
    %18 = vector.broadcast %cst_8 : f32 to vector<1x128xf32>
    %19 = arith.select %17, %8, %18 : vector<1x128xi1>, vector<1x128xf32>
    %cst_9 = arith.constant dense<0xFF800000> : vector<1xf32>
    %20 = vector.multi_reduction <maximumf>, %19, %cst_9 [1] : vector<1x128xf32> to vector<1xf32>
    %21 = vector.shape_cast %20 : vector<1xf32> to vector<1x1xf32>
    %c2_i32 = arith.constant 2 : i32
    %22 = vector.broadcast %c2_i32 : i32 to vector<1x128xi32>
    %23 = arith.cmpi eq, %9, %22 : vector<1x128xi32>
    %cst_10 = arith.constant 0xFF800000 : f32
    %24 = vector.broadcast %cst_10 : f32 to vector<1x128xf32>
    %25 = arith.select %23, %8, %24 : vector<1x128xi1>, vector<1x128xf32>
    %cst_11 = arith.constant dense<0xFF800000> : vector<1xf32>
    %26 = vector.multi_reduction <maximumf>, %25, %cst_11 [1] : vector<1x128xf32> to vector<1xf32>
    %27 = vector.shape_cast %26 : vector<1xf32> to vector<1x1xf32>
    %c3_i32 = arith.constant 3 : i32
    %28 = vector.broadcast %c3_i32 : i32 to vector<1x128xi32>
    %29 = arith.cmpi eq, %9, %28 : vector<1x128xi32>
    %cst_12 = arith.constant 0xFF800000 : f32
    %30 = vector.broadcast %cst_12 : f32 to vector<1x128xf32>
    %31 = arith.select %29, %8, %30 : vector<1x128xi1>, vector<1x128xf32>
    %cst_13 = arith.constant dense<0xFF800000> : vector<1xf32>
    %32 = vector.multi_reduction <maximumf>, %31, %cst_13 [1] : vector<1x128xf32> to vector<1xf32>
    %33 = vector.shape_cast %32 : vector<1xf32> to vector<1x1xf32>
    %c4_i32 = arith.constant 4 : i32
    %34 = vector.broadcast %c4_i32 : i32 to vector<1x128xi32>
    %35 = arith.cmpi eq, %9, %34 : vector<1x128xi32>
    %cst_14 = arith.constant 0xFF800000 : f32
    %36 = vector.broadcast %cst_14 : f32 to vector<1x128xf32>
    %37 = arith.select %35, %8, %36 : vector<1x128xi1>, vector<1x128xf32>
    %cst_15 = arith.constant dense<0xFF800000> : vector<1xf32>
    %38 = vector.multi_reduction <maximumf>, %37, %cst_15 [1] : vector<1x128xf32> to vector<1xf32>
    %39 = vector.shape_cast %38 : vector<1xf32> to vector<1x1xf32>
    %c5_i32 = arith.constant 5 : i32
    %40 = vector.broadcast %c5_i32 : i32 to vector<1x128xi32>
    %41 = arith.cmpi eq, %9, %40 : vector<1x128xi32>
    %cst_16 = arith.constant 0xFF800000 : f32
    %42 = vector.broadcast %cst_16 : f32 to vector<1x128xf32>
    %43 = arith.select %41, %8, %42 : vector<1x128xi1>, vector<1x128xf32>
    %cst_17 = arith.constant dense<0xFF800000> : vector<1xf32>
    %44 = vector.multi_reduction <maximumf>, %43, %cst_17 [1] : vector<1x128xf32> to vector<1xf32>
    %45 = vector.shape_cast %44 : vector<1xf32> to vector<1x1xf32>
    %c6_i32 = arith.constant 6 : i32
    %46 = vector.broadcast %c6_i32 : i32 to vector<1x128xi32>
    %47 = arith.cmpi eq, %9, %46 : vector<1x128xi32>
    %cst_18 = arith.constant 0xFF800000 : f32
    %48 = vector.broadcast %cst_18 : f32 to vector<1x128xf32>
    %49 = arith.select %47, %8, %48 : vector<1x128xi1>, vector<1x128xf32>
    %cst_19 = arith.constant dense<0xFF800000> : vector<1xf32>
    %50 = vector.multi_reduction <maximumf>, %49, %cst_19 [1] : vector<1x128xf32> to vector<1xf32>
    %51 = vector.shape_cast %50 : vector<1xf32> to vector<1x1xf32>
    %c7_i32 = arith.constant 7 : i32
    %52 = vector.broadcast %c7_i32 : i32 to vector<1x128xi32>
    %53 = arith.cmpi eq, %9, %52 : vector<1x128xi32>
    %cst_20 = arith.constant 0xFF800000 : f32
    %54 = vector.broadcast %cst_20 : f32 to vector<1x128xf32>
    %55 = arith.select %53, %8, %54 : vector<1x128xi1>, vector<1x128xf32>
    %cst_21 = arith.constant dense<0xFF800000> : vector<1xf32>
    %56 = vector.multi_reduction <maximumf>, %55, %cst_21 [1] : vector<1x128xf32> to vector<1xf32>
    %57 = vector.shape_cast %56 : vector<1xf32> to vector<1x1xf32>
    %58 = arith.cmpf oge, %15, %21 : vector<1x1xf32>
    %59 = arith.maximumf %15, %21 : vector<1x1xf32>
    %60 = arith.cmpf oge, %27, %33 : vector<1x1xf32>
    %61 = arith.maximumf %27, %33 : vector<1x1xf32>
    %62 = arith.cmpf oge, %39, %45 : vector<1x1xf32>
    %63 = arith.maximumf %39, %45 : vector<1x1xf32>
    %64 = arith.cmpf oge, %51, %57 : vector<1x1xf32>
    %65 = arith.maximumf %51, %57 : vector<1x1xf32>
    %66 = arith.maximumf %59, %61 : vector<1x1xf32>
    %67 = arith.subf %59, %66 : vector<1x1xf32>
    %68 = math.exp %67 : vector<1x1xf32>
    %69 = arith.subf %61, %66 : vector<1x1xf32>
    %70 = math.exp %69 : vector<1x1xf32>
    %71 = arith.addf %68, %70 : vector<1x1xf32>
    %cst_22 = arith.constant 1.000000e+00 : f32
    %72 = vector.broadcast %cst_22 : f32 to vector<1x1xf32>
    %73 = arith.divf %72, %71 : vector<1x1xf32>
    %74 = arith.mulf %68, %73 : vector<1x1xf32>
    %75 = arith.mulf %70, %73 : vector<1x1xf32>
    %76 = arith.maximumf %63, %65 : vector<1x1xf32>
    %77 = arith.subf %63, %76 : vector<1x1xf32>
    %78 = math.exp %77 : vector<1x1xf32>
    %79 = arith.subf %65, %76 : vector<1x1xf32>
    %80 = math.exp %79 : vector<1x1xf32>
    %81 = arith.addf %78, %80 : vector<1x1xf32>
    %cst_23 = arith.constant 1.000000e+00 : f32
    %82 = vector.broadcast %cst_23 : f32 to vector<1x1xf32>
    %83 = arith.divf %82, %81 : vector<1x1xf32>
    %84 = arith.mulf %78, %83 : vector<1x1xf32>
    %85 = arith.mulf %80, %83 : vector<1x1xf32>
    %86 = vector.extract_strided_slice %5 {offsets = [0, 0], sizes = [1, 128], strides = [1, 1]} : vector<1x1152xf32> to vector<1x128xf32>
    %87 = vector.extract_strided_slice %5 {offsets = [0, 128], sizes = [1, 128], strides = [1, 1]} : vector<1x1152xf32> to vector<1x128xf32>
    %88 = vector.shape_cast %58 : vector<1x1xi1> to vector<1x1xi1>
    %89 = vector.broadcast %88 : vector<1x1xi1> to vector<1x128xi1>
    %90 = arith.select %89, %86, %87 : vector<1x128xi1>, vector<1x128xf32>
    %91 = vector.broadcast %74 : vector<1x1xf32> to vector<1x128xf32>
    %92 = arith.mulf %91, %90 : vector<1x128xf32>
    %93 = vector.extract_strided_slice %5 {offsets = [0, 256], sizes = [1, 128], strides = [1, 1]} : vector<1x1152xf32> to vector<1x128xf32>
    %94 = vector.extract_strided_slice %5 {offsets = [0, 384], sizes = [1, 128], strides = [1, 1]} : vector<1x1152xf32> to vector<1x128xf32>
    %95 = vector.shape_cast %60 : vector<1x1xi1> to vector<1x1xi1>
    %96 = vector.broadcast %95 : vector<1x1xi1> to vector<1x128xi1>
    %97 = arith.select %96, %93, %94 : vector<1x128xi1>, vector<1x128xf32>
    %98 = vector.broadcast %75 : vector<1x1xf32> to vector<1x128xf32>
    %99 = arith.mulf %98, %97 : vector<1x128xf32>
    %100 = arith.addf %92, %99 : vector<1x128xf32>
    %101 = vector.extract_strided_slice %5 {offsets = [0, 512], sizes = [1, 128], strides = [1, 1]} : vector<1x1152xf32> to vector<1x128xf32>
    %102 = vector.extract_strided_slice %5 {offsets = [0, 640], sizes = [1, 128], strides = [1, 1]} : vector<1x1152xf32> to vector<1x128xf32>
    %103 = vector.shape_cast %62 : vector<1x1xi1> to vector<1x1xi1>
    %104 = vector.broadcast %103 : vector<1x1xi1> to vector<1x128xi1>
    %105 = arith.select %104, %101, %102 : vector<1x128xi1>, vector<1x128xf32>
    %106 = vector.broadcast %84 : vector<1x1xf32> to vector<1x128xf32>
    %107 = arith.mulf %106, %105 : vector<1x128xf32>
    %108 = vector.extract_strided_slice %5 {offsets = [0, 768], sizes = [1, 128], strides = [1, 1]} : vector<1x1152xf32> to vector<1x128xf32>
    %109 = vector.extract_strided_slice %5 {offsets = [0, 896], sizes = [1, 128], strides = [1, 1]} : vector<1x1152xf32> to vector<1x128xf32>
    %110 = vector.shape_cast %64 : vector<1x1xi1> to vector<1x1xi1>
    %111 = vector.broadcast %110 : vector<1x1xi1> to vector<1x128xi1>
    %112 = arith.select %111, %108, %109 : vector<1x128xi1>, vector<1x128xf32>
    %113 = vector.broadcast %85 : vector<1x1xf32> to vector<1x128xf32>
    %114 = arith.mulf %113, %112 : vector<1x128xf32>
    %115 = arith.addf %107, %114 : vector<1x128xf32>
    %116 = arith.addf %100, %115 : vector<1x128xf32>
    %c0_24 = arith.constant 0 : index
    %c0_25 = arith.constant 0 : index
    %117 = vector.load %arg3[%c0_24, %c0_25] : memref<1x128xf32, #tpu.memory_space<vmem>>, vector<1x128xf32>
    tpu.vector_store %arg3[%c0_24, %c0_25], %116 {strides = array<i32>} : memref<1x128xf32, #tpu.memory_space<vmem>>, vector<1x128xf32>,
    %118 = arith.cmpf oge, %59, %61 : vector<1x1xf32>
    %c0_i32_26 = arith.constant 0 : i32
    %c1_i32_27 = arith.constant 1 : i32
    %119 = vector.broadcast %c0_i32_26 : i32 to vector<1x1xi32>
    %120 = vector.broadcast %c1_i32_27 : i32 to vector<1x1xi32>
    %121 = arith.select %118, %119, %120 : vector<1x1xi1>, vector<1x1xi32>
    %122 = arith.cmpf oge, %63, %65 : vector<1x1xf32>
    %c0_i32_28 = arith.constant 0 : i32
    %c1_i32_29 = arith.constant 1 : i32
    %123 = vector.broadcast %c0_i32_28 : i32 to vector<1x1xi32>
    %124 = vector.broadcast %c1_i32_29 : i32 to vector<1x1xi32>
    %125 = arith.select %122, %123, %124 : vector<1x1xi1>, vector<1x1xi32>
    %126 = tpu.iota {dimensions = array<i32: 1>} : vector<1x2xi32>
    %c0_i32_30 = arith.constant 0 : i32
    %127 = vector.broadcast %c0_i32_30 : i32 to vector<1x2xi32>
    %128 = arith.cmpi eq, %126, %127 : vector<1x2xi32>
    %129 = vector.shape_cast %121 : vector<1x1xi32> to vector<1x1xi32>
    %130 = vector.broadcast %129 : vector<1x1xi32> to vector<1x2xi32>
    %131 = vector.shape_cast %125 : vector<1x1xi32> to vector<1x1xi32>
    %132 = vector.broadcast %131 : vector<1x1xi32> to vector<1x2xi32>
    %133 = arith.select %128, %130, %132 : vector<1x2xi1>, vector<1x2xi32>
    %c0_31 = arith.constant 0 : index
    %c0_32 = arith.constant 0 : index
    %134 = vector.load %arg4[%c0_31, %c0_32] : memref<1x2xi32, #tpu.memory_space<vmem>>, vector<1x2xi32>
    tpu.vector_store %arg4[%c0_31, %c0_32], %133 {strides = array<i32>} : memref<1x2xi32, #tpu.memory_space<vmem>>, vector<1x2xi32>,
    return
  }
}

</mosaic_0001>

<llo_original>
// kernel: gate_network_forward.1
$region0: #{gate_network_forward.1}
  #allocation0 [shape = 'u32[]', space=smem, size = 0x4, offset = 0x4, fixed_abs, tag = 'smem constant byte address 0x4 - core index']
  #allocation1 [shape = 'u32[144,128]{1,0:T(1,128)}', space=vmem, size = 0x12000, scoped, tag = 'internal scratch']
  %s0 = inlined_call_operand.vmem [shape: f32[1,128], index: 0, kind: input, shape index: {}]
  %s1 = inlined_call_operand.hbm [shape: bf16[128,1152], index: 1, kind: input, shape index: {}]
  %s2 = inlined_call_operand.vmem [shape: f32[1,1152], index: 2, kind: input, shape index: {}]
  %s3 = inlined_call_operand.hbm [shape: f32[1,128], index: 3, kind: output, shape index: {0}]
  %s4 = inlined_call_operand.vmem [shape: s32[1,2], index: 4, kind: output, shape index: {1}]
  %5 = xla_tuple %s3, %s4
  %s6 = sld [smem:[#allocation0]]
  $region34: #{gate_network_forward.1} parent=0
    _
  %s8 = ssub.s32 1, %s6
  %s9 = scalar_select 0, %s8, %s6
  $region1: #{gate_network_forward.1} parent=0
    #allocation2 [shape = 'u8[294912]{0}', space=vmem, size = 0x48000, scoped, tag = 'input window, operand 1, single buffered']
    #allocation3 [shape = 's32[1]{0}', space=sflag, size = 0x4, scoped, tag = 'scoped memory for gate_network_forward.1']
    #allocation4 [shape = 's32[1]{0}', space=sflag, size = 0x4, scoped, tag = 'scoped memory for gate_network_forward.1']
    #allocation5 [shape = 'u8[512]{0}', space=vmem, size = 0x400, scoped, tag = 'output window, operand 0, single buffered']
    %10 = vsyncpa [#allocation3], 0
    %11 = vsyncpa [#allocation4], 0
    // Predicated region
    $region2: #{gate_network_forward.1} parent=1 // pred_check
      _
    $region3: #{gate_network_forward.1} parent=1 // pred_check_branch
      %13 = sbr.rel (0) target = $region5
    $region4: #{gate_network_forward.1} parent=1 // pred_region
      _
    $region5: #{gate_network_forward.1} parent=1 // pred_fallthru
      _
    // Predicated region
    $region6: #{gate_network_forward.1} parent=1 // pred_check
      _
    $region7: #{gate_network_forward.1} parent=1 // pred_check_branch
      %15 = sbr.rel (0) target = $region9
    $region8: #{gate_network_forward.1} parent=1 // pred_region
      %s17 = ssub.s32 9216, 9216
      %18 = vsyncadd [#allocation3], %s17
      %s19 = sshll.u32 [#allocation2], 4
      %s20 = int_to_ptr.vmem [resolvable:$true] %s19
      %25 = dma.hbm_to_vmem [thread:$0]  %s1, 9216, %s20, [#allocation3], 576, 576, 36
    $region9: #{gate_network_forward.1} parent=1 // pred_fallthru
      _
    // Predicated region
    $region10: #{gate_network_forward.1} parent=1 // pred_check
      _
    $region11: #{gate_network_forward.1} parent=1 // pred_check_branch
      %27 = sbr.rel (0) target = $region13
    $region12: #{gate_network_forward.1} parent=1 // pred_region
      _
    $region13: #{gate_network_forward.1} parent=1 // pred_fallthru
      _
    // Predicated region
    $region14: #{gate_network_forward.1} parent=1 // pred_check
      _
    $region15: #{gate_network_forward.1} parent=1 // pred_check_branch
      %29 = sbr.rel (0) target = $region17
    $region16: #{gate_network_forward.1} parent=1 // pred_region
      %30 = dma.done [#allocation3], 9216
    $region17: #{gate_network_forward.1} parent=1 // pred_fallthru
      _
    %v32 = vld [vmem:[%s0] sm:$0x1]
    %v33 = vpack.c.bf16 %v32, %v32
    %v34 = vld [vmem:[#allocation2] sm:$0xff]
    %v35 = vld [vmem:[#allocation2 + $0x8] sm:$0xff]
    %v36 = vld [vmem:[#allocation2 + $0x10] sm:$0xff]
    %v37 = vld [vmem:[#allocation2 + $0x18] sm:$0xff]
    %v38 = vld [vmem:[#allocation2 + $0x20] sm:$0xf]
    %v39 = vld [vmem:[#allocation2 + $0x24] sm:$0xff]
    %v40 = vld [vmem:[#allocation2 + $0x2c] sm:$0xff]
    %v41 = vld [vmem:[#allocation2 + $0x34] sm:$0xff]
    %v42 = vld [vmem:[#allocation2 + $0x3c] sm:$0xff]
    %v43 = vld [vmem:[#allocation2 + $0x44] sm:$0xf]
    %v44 = vld [vmem:[#allocation2 + $0x48] sm:$0xff]
    %v45 = vld [vmem:[#allocation2 + $0x50] sm:$0xff]
    %v46 = vld [vmem:[#allocation2 + $0x58] sm:$0xff]
    %v47 = vld [vmem:[#allocation2 + $0x60] sm:$0xff]
    %v48 = vld [vmem:[#allocation2 + $0x68] sm:$0xf]
    %v49 = vld [vmem:[#allocation2 + $0x6c] sm:$0xff]
    %v50 = vld [vmem:[#allocation2 + $0x74] sm:$0xff]
    %v51 = vld [vmem:[#allocation2 + $0x7c] sm:$0xff]
    %v52 = vld [vmem:[#allocation2 + $0x84] sm:$0xff]
    %v53 = vld [vmem:[#allocation2 + $0x8c] sm:$0xf]
    %v54 = vld [vmem:[#allocation2 + $0x90] sm:$0xff]
    %v55 = vld [vmem:[#allocation2 + $0x98] sm:$0xff]
    %v56 = vld [vmem:[#allocation2 + $0xa0] sm:$0xff]
    %v57 = vld [vmem:[#allocation2 + $0xa8] sm:$0xff]
    %v58 = vld [vmem:[#allocation2 + $0xb0] sm:$0xf]
    %v59 = vld [vmem:[#allocation2 + $0xb4] sm:$0xff]
    %v60 = vld [vmem:[#allocation2 + $0xbc] sm:$0xff]
    %v61 = vld [vmem:[#allocation2 + $0xc4] sm:$0xff]
    %v62 = vld [vmem:[#allocation2 + $0xcc] sm:$0xff]
    %v63 = vld [vmem:[#allocation2 + $0xd4] sm:$0xf]
    %v64 = vld [vmem:[#allocation2 + $0xd8] sm:$0xff]
    %v65 = vld [vmem:[#allocation2 + $0xe0] sm:$0xff]
    %v66 = vld [vmem:[#allocation2 + $0xe8] sm:$0xff]
    %v67 = vld [vmem:[#allocation2 + $0xf0] sm:$0xff]
    %v68 = vld [vmem:[#allocation2 + $0xf8] sm:$0xf]
    %v69 = vld [vmem:[#allocation2 + $0xfc] sm:$0xff]
    %v70 = vld [vmem:[#allocation2 + $0x104] sm:$0xff]
    %v71 = vld [vmem:[#allocation2 + $0x10c] sm:$0xff]
    %v72 = vld [vmem:[#allocation2 + $0x114] sm:$0xff]
    %v73 = vld [vmem:[#allocation2 + $0x11c] sm:$0xf]
    %v74 = vld [vmem:[#allocation2 + $0x120] sm:$0xff]
    %v75 = vld [vmem:[#allocation2 + $0x128] sm:$0xff]
    %v76 = vld [vmem:[#allocation2 + $0x130] sm:$0xff]
    %v77 = vld [vmem:[#allocation2 + $0x138] sm:$0xff]
    %v78 = vld [vmem:[#allocation2 + $0x140] sm:$0xf]
    %v79 = vld [vmem:[#allocation2 + $0x144] sm:$0xff]
    %v80 = vld [vmem:[#allocation2 + $0x14c] sm:$0xff]
    %v81 = vld [vmem:[#allocation2 + $0x154] sm:$0xff]
    %v82 = vld [vmem:[#allocation2 + $0x15c] sm:$0xff]
    %v83 = vld [vmem:[#allocation2 + $0x164] sm:$0xf]
    %v84 = vld [vmem:[#allocation2 + $0x168] sm:$0xff]
    %v85 = vld [vmem:[#allocation2 + $0x170] sm:$0xff]
    %v86 = vld [vmem:[#allocation2 + $0x178] sm:$0xff]
    %v87 = vld [vmem:[#allocation2 + $0x180] sm:$0xff]
    %v88 = vld [vmem:[#allocation2 + $0x188] sm:$0xf]
    %v89 = vld [vmem:[#allocation2 + $0x18c] sm:$0xff]
    %v90 = vld [vmem:[#allocation2 + $0x194] sm:$0xff]
    %v91 = vld [vmem:[#allocation2 + $0x19c] sm:$0xff]
    %v92 = vld [vmem:[#allocation2 + $0x1a4] sm:$0xff]
    %v93 = vld [vmem:[#allocation2 + $0x1ac] sm:$0xf]
    %v94 = vld [vmem:[#allocation2 + $0x1b0] sm:$0xff]
    %v95 = vld [vmem:[#allocation2 + $0x1b8] sm:$0xff]
    %v96 = vld [vmem:[#allocation2 + $0x1c0] sm:$0xff]
    %v97 = vld [vmem:[#allocation2 + $0x1c8] sm:$0xff]
    %v98 = vld [vmem:[#allocation2 + $0x1d0] sm:$0xf]
    %v99 = vld [vmem:[#allocation2 + $0x1d4] sm:$0xff]
    %v100 = vld [vmem:[#allocation2 + $0x1dc] sm:$0xff]
    %v101 = vld [vmem:[#allocation2 + $0x1e4] sm:$0xff]
    %v102 = vld [vmem:[#allocation2 + $0x1ec] sm:$0xff]
    %v103 = vld [vmem:[#allocation2 + $0x1f4] sm:$0xf]
    %v104 = vld [vmem:[#allocation2 + $0x1f8] sm:$0xff]
    %v105 = vld [vmem:[#allocation2 + $0x200] sm:$0xff]
    %v106 = vld [vmem:[#allocation2 + $0x208] sm:$0xff]
    %v107 = vld [vmem:[#allocation2 + $0x210] sm:$0xff]
    %v108 = vld [vmem:[#allocation2 + $0x218] sm:$0xf]
    %v109 = vld [vmem:[#allocation2 + $0x21c] sm:$0xff]
    %v110 = vld [vmem:[#allocation2 + $0x224] sm:$0xff]
    %v111 = vld [vmem:[#allocation2 + $0x22c] sm:$0xff]
    %v112 = vld [vmem:[#allocation2 + $0x234] sm:$0xff]
    %v113 = vld [vmem:[#allocation2 + $0x23c] sm:$0xf]
    %v114 = vld [vmem:[%s2] sm:$0xff]
    %v115 = vld [vmem:[%s2 + $0x8] sm:$0x1]
    %v196 = vunpack.c.l.b16 %v34
    %v197 = vunpack.c.h.b16 %v34
    %v198 = vunpack.c.l.b16 %v35
    %v199 = vunpack.c.h.b16 %v35
    %v200 = vunpack.c.l.b16 %v36
    %v201 = vunpack.c.h.b16 %v36
    %v202 = vunpack.c.l.b16 %v37
    %v203 = vunpack.c.h.b16 %v37
    %v204 = vunpack.c.l.b16 %v38
    %v205 = vunpack.c.l.b16 %v39
    %v206 = vunpack.c.h.b16 %v39
    %v207 = vunpack.c.l.b16 %v40
    %v208 = vunpack.c.h.b16 %v40
    %v209 = vunpack.c.l.b16 %v41
    %v210 = vunpack.c.h.b16 %v41
    %v211 = vunpack.c.l.b16 %v42
    %v212 = vunpack.c.h.b16 %v42
    %v213 = vunpack.c.l.b16 %v43
    %v214 = vunpack.c.l.b16 %v44
    %v215 = vunpack.c.h.b16 %v44
    %v216 = vunpack.c.l.b16 %v45
    %v217 = vunpack.c.h.b16 %v45
    %v218 = vunpack.c.l.b16 %v46
    %v219 = vunpack.c.h.b16 %v46
    %v220 = vunpack.c.l.b16 %v47
    %v221 = vunpack.c.h.b16 %v47
    %v222 = vunpack.c.l.b16 %v48
    %v223 = vunpack.c.l.b16 %v49
    %v224 = vunpack.c.h.b16 %v49
    %v225 = vunpack.c.l.b16 %v50
    %v226 = vunpack.c.h.b16 %v50
    %v227 = vunpack.c.l.b16 %v51
    %v228 = vunpack.c.h.b16 %v51
    %v229 = vunpack.c.l.b16 %v52
    %v230 = vunpack.c.h.b16 %v52
    %v231 = vunpack.c.l.b16 %v53
    %v232 = vunpack.c.l.b16 %v54
    %v233 = vunpack.c.h.b16 %v54
    %v234 = vunpack.c.l.b16 %v55
    %v235 = vunpack.c.h.b16 %v55
    %v236 = vunpack.c.l.b16 %v56
    %v237 = vunpack.c.h.b16 %v56
    %v238 = vunpack.c.l.b16 %v57
    %v239 = vunpack.c.h.b16 %v57
    %v240 = vunpack.c.l.b16 %v58
    %v241 = vunpack.c.l.b16 %v59
    %v242 = vunpack.c.h.b16 %v59
    %v243 = vunpack.c.l.b16 %v60
    %v244 = vunpack.c.h.b16 %v60
    %v245 = vunpack.c.l.b16 %v61
    %v246 = vunpack.c.h.b16 %v61
    %v247 = vunpack.c.l.b16 %v62
    %v248 = vunpack.c.h.b16 %v62
    %v249 = vunpack.c.l.b16 %v63
    %v250 = vunpack.c.l.b16 %v64
    %v251 = vunpack.c.h.b16 %v64
    %v252 = vunpack.c.l.b16 %v65
    %v253 = vunpack.c.h.b16 %v65
    %v254 = vunpack.c.l.b16 %v66
    %v255 = vunpack.c.h.b16 %v66
    %v256 = vunpack.c.l.b16 %v67
    %v257 = vunpack.c.h.b16 %v67
    %v258 = vunpack.c.l.b16 %v68
    %v259 = vunpack.c.l.b16 %v69
    %v260 = vunpack.c.h.b16 %v69
    %v261 = vunpack.c.l.b16 %v70
    %v262 = vunpack.c.h.b16 %v70
    %v263 = vunpack.c.l.b16 %v71
    %v264 = vunpack.c.h.b16 %v71
    %v265 = vunpack.c.l.b16 %v72
    %v266 = vunpack.c.h.b16 %v72
    %v267 = vunpack.c.l.b16 %v73
    %v268 = vunpack.c.l.b16 %v74
    %v269 = vunpack.c.h.b16 %v74
    %v270 = vunpack.c.l.b16 %v75
    %v271 = vunpack.c.h.b16 %v75
    %v272 = vunpack.c.l.b16 %v76
    %v273 = vunpack.c.h.b16 %v76
    %v274 = vunpack.c.l.b16 %v77
    %v275 = vunpack.c.h.b16 %v77
    %v276 = vunpack.c.l.b16 %v78
    %v277 = vunpack.c.l.b16 %v79
    %v278 = vunpack.c.h.b16 %v79
    %v279 = vunpack.c.l.b16 %v80
    %v280 = vunpack.c.h.b16 %v80
    %v281 = vunpack.c.l.b16 %v81
    %v282 = vunpack.c.h.b16 %v81
    %v283 = vunpack.c.l.b16 %v82
    %v284 = vunpack.c.h.b16 %v82
    %v285 = vunpack.c.l.b16 %v83
    %v286 = vunpack.c.l.b16 %v84
    %v287 = vunpack.c.h.b16 %v84
    %v288 = vunpack.c.l.b16 %v85
    %v289 = vunpack.c.h.b16 %v85
    %v290 = vunpack.c.l.b16 %v86
    %v291 = vunpack.c.h.b16 %v86
    %v292 = vunpack.c.l.b16 %v87
    %v293 = vunpack.c.h.b16 %v87
    %v294 = vunpack.c.l.b16 %v88
    %v295 = vunpack.c.l.b16 %v89
    %v296 = vunpack.c.h.b16 %v89
    %v297 = vunpack.c.l.b16 %v90
    %v298 = vunpack.c.h.b16 %v90
    %v299 = vunpack.c.l.b16 %v91
    %v300 = vunpack.c.h.b16 %v91
    %v301 = vunpack.c.l.b16 %v92
    %v302 = vunpack.c.h.b16 %v92
    %v303 = vunpack.c.l.b16 %v93
    %v304 = vunpack.c.l.b16 %v94
    %v305 = vunpack.c.h.b16 %v94
    %v306 = vunpack.c.l.b16 %v95
    %v307 = vunpack.c.h.b16 %v95
    %v308 = vunpack.c.l.b16 %v96
    %v309 = vunpack.c.h.b16 %v96
    %v310 = vunpack.c.l.b16 %v97
    %v311 = vunpack.c.h.b16 %v97
    %v312 = vunpack.c.l.b16 %v98
    %v313 = vunpack.c.l.b16 %v99
    %v314 = vunpack.c.h.b16 %v99
    %v315 = vunpack.c.l.b16 %v100
    %v316 = vunpack.c.h.b16 %v100
    %v317 = vunpack.c.l.b16 %v101
    %v318 = vunpack.c.h.b16 %v101
    %v319 = vunpack.c.l.b16 %v102
    %v320 = vunpack.c.h.b16 %v102
    %v321 = vunpack.c.l.b16 %v103
    %v322 = vunpack.c.l.b16 %v104
    %v323 = vunpack.c.h.b16 %v104
    %v324 = vunpack.c.l.b16 %v105
    %v325 = vunpack.c.h.b16 %v105
    %v326 = vunpack.c.l.b16 %v106
    %v327 = vunpack.c.h.b16 %v106
    %v328 = vunpack.c.l.b16 %v107
    %v329 = vunpack.c.h.b16 %v107
    %v330 = vunpack.c.l.b16 %v108
    %v331 = vunpack.c.l.b16 %v109
    %v332 = vunpack.c.h.b16 %v109
    %v333 = vunpack.c.l.b16 %v110
    %v334 = vunpack.c.h.b16 %v110
    %v335 = vunpack.c.l.b16 %v111
    %v336 = vunpack.c.h.b16 %v111
    %v337 = vunpack.c.l.b16 %v112
    %v338 = vunpack.c.h.b16 %v112
    %v339 = vunpack.c.l.b16 %v113
    %v340 = vpack.c.b16 %v205, %v196
    %v341 = vpack.c.b16 %v206, %v197
    %v342 = vpack.c.b16 %v207, %v198
    %v343 = vpack.c.b16 %v208, %v199
    %v344 = vpack.c.b16 %v209, %v200
    %v345 = vpack.c.b16 %v210, %v201
    %v346 = vpack.c.b16 %v211, %v202
    %v347 = vpack.c.b16 %v212, %v203
    %v348 = vpack.c.b16 %v213, %v204
    %v349 = vpack.c.b16 %v223, %v214
    %v350 = vpack.c.b16 %v224, %v215
    %v351 = vpack.c.b16 %v225, %v216
    %v352 = vpack.c.b16 %v226, %v217
    %v353 = vpack.c.b16 %v227, %v218
    %v354 = vpack.c.b16 %v228, %v219
    %v355 = vpack.c.b16 %v229, %v220
    %v356 = vpack.c.b16 %v230, %v221
    %v357 = vpack.c.b16 %v231, %v222
    %v358 = vpack.c.b16 %v241, %v232
    %v359 = vpack.c.b16 %v242, %v233
    %v360 = vpack.c.b16 %v243, %v234
    %v361 = vpack.c.b16 %v244, %v235
    %v362 = vpack.c.b16 %v245, %v236
    %v363 = vpack.c.b16 %v246, %v237
    %v364 = vpack.c.b16 %v247, %v238
    %v365 = vpack.c.b16 %v248, %v239
    %v366 = vpack.c.b16 %v249, %v240
    %v367 = vpack.c.b16 %v259, %v250
    %v368 = vpack.c.b16 %v260, %v251
    %v369 = vpack.c.b16 %v261, %v252
    %v370 = vpack.c.b16 %v262, %v253
    %v371 = vpack.c.b16 %v263, %v254
    %v372 = vpack.c.b16 %v264, %v255
    %v373 = vpack.c.b16 %v265, %v256
    %v374 = vpack.c.b16 %v266, %v257
    %v375 = vpack.c.b16 %v267, %v258
    %v376 = vpack.c.b16 %v277, %v268
    %v377 = vpack.c.b16 %v278, %v269
    %v378 = vpack.c.b16 %v279, %v270
    %v379 = vpack.c.b16 %v280, %v271
    %v380 = vpack.c.b16 %v281, %v272
    %v381 = vpack.c.b16 %v282, %v273
    %v382 = vpack.c.b16 %v283, %v274
    %v383 = vpack.c.b16 %v284, %v275
    %v384 = vpack.c.b16 %v285, %v276
    %v385 = vpack.c.b16 %v295, %v286
    %v386 = vpack.c.b16 %v296, %v287
    %v387 = vpack.c.b16 %v297, %v288
    %v388 = vpack.c.b16 %v298, %v289
    %v389 = vpack.c.b16 %v299, %v290
    %v390 = vpack.c.b16 %v300, %v291
    %v391 = vpack.c.b16 %v301, %v292
    %v392 = vpack.c.b16 %v302, %v293
    %v393 = vpack.c.b16 %v303, %v294
    %v394 = vpack.c.b16 %v313, %v304
    %v395 = vpack.c.b16 %v314, %v305
    %v396 = vpack.c.b16 %v315, %v306
    %v397 = vpack.c.b16 %v316, %v307
    %v398 = vpack.c.b16 %v317, %v308
    %v399 = vpack.c.b16 %v318, %v309
    %v400 = vpack.c.b16 %v319, %v310
    %v401 = vpack.c.b16 %v320, %v311
    %v402 = vpack.c.b16 %v321, %v312
    %v403 = vpack.c.b16 %v331, %v322
    %v404 = vpack.c.b16 %v332, %v323
    %v405 = vpack.c.b16 %v333, %v324
    %v406 = vpack.c.b16 %v334, %v325
    %v407 = vpack.c.b16 %v335, %v326
    %v408 = vpack.c.b16 %v336, %v327
    %v409 = vpack.c.b16 %v337, %v328
    %v410 = vpack.c.b16 %v338, %v329
    %v411 = vpack.c.b16 %v339, %v330
    %v486 = vlaneseq
    %v487 = vshrl.u32 %v486, 7
    %v488 = vsub.s32 0, %v487
    %v489 = vrot.slane %v114, %v488
    %v490 = vlaneseq
    %v491 = vshrl.u32 %v490, 7
    %v492 = vsub.s32 1, %v491
    %v493 = vrot.slane %v114, %v492
    %v494 = vlaneseq
    %v495 = vshrl.u32 %v494, 7
    %v496 = vsub.s32 2, %v495
    %v497 = vrot.slane %v114, %v496
    %v498 = vlaneseq
    %v499 = vshrl.u32 %v498, 7
    %v500 = vsub.s32 3, %v499
    %v501 = vrot.slane %v114, %v500
    %v502 = vlaneseq
    %v503 = vshrl.u32 %v502, 7
    %v504 = vsub.s32 4, %v503
    %v505 = vrot.slane %v114, %v504
    %v506 = vlaneseq
    %v507 = vshrl.u32 %v506, 7
    %v508 = vsub.s32 5, %v507
    %v509 = vrot.slane %v114, %v508
    %v510 = vlaneseq
    %v511 = vshrl.u32 %v510, 7
    %v512 = vsub.s32 6, %v511
    %v513 = vrot.slane %v114, %v512
    %v514 = vlaneseq
    %v515 = vshrl.u32 %v514, 7
    %v516 = vsub.s32 7, %v515
    %v517 = vrot.slane %v114, %v516
    %v518 = vlaneseq
    %v519 = vshrl.u32 %v518, 7
    %v520 = vsub.s32 0, %v519
    %v521 = vrot.slane %v115, %v520
    %531 = vmatprep.subr.bf16.mxu0 %v341
    %532 = vmatpush1.bf16.msra.mxu0 %v340
    %533 = vmatprep.subr.bf16.mxu0 %v350
    %534 = vmatpush1.bf16.msra.mxu0 %v349
    %535 = vmatprep.subr.bf16.mxu0 %v359
    %536 = vmatpush1.bf16.msra.mxu0 %v358
    %537 = vmatprep.subr.bf16.mxu0 %v368
    %538 = vmatpush1.bf16.msra.mxu0 %v367
    %539 = vmatprep.subr.bf16.mxu0 %v377
    %540 = vmatpush1.bf16.msra.mxu0 %v376
    %541 = vmatprep.subr.bf16.mxu0 %v386
    %542 = vmatpush1.bf16.msra.mxu0 %v385
    %543 = vmatprep.subr.bf16.mxu0 %v395
    %544 = vmatpush1.bf16.msra.mxu0 %v394
    %545 = vmatprep.subr.bf16.mxu0 %v404
    %546 = vmatpush1.bf16.msra.mxu0 %v403
    %547 = vmatprep.subr.bf16.mxu0 0
    %548 = vmatpush1.bf16.msra.mxu0 0
    %549 = vmatprep.subr.bf16.mxu0 0
    %550 = vmatpush1.bf16.msra.mxu0 0
    %551 = vmatprep.subr.bf16.mxu0 0
    %552 = vmatpush1.bf16.msra.mxu0 0
    %553 = vmatprep.subr.bf16.mxu0 0
    %554 = vmatpush1.bf16.msra.mxu0 0
    %555 = vmatprep.subr.bf16.mxu0 0
    %556 = vmatpush1.bf16.msra.mxu0 0
    %557 = vmatprep.subr.bf16.mxu0 0
    %558 = vmatpush1.bf16.msra.mxu0 0
    %559 = vmatprep.subr.bf16.mxu0 0
    %560 = vmatpush1.bf16.msra.mxu0 0
    %561 = vmatprep.subr.bf16.mxu0 0
    %562 = vmatpush1.bf16.msra.mxu0 0
    %563 = vmatprep.mubr.bf16.mxu0 0
    %564 = vmatmul.mubr.bf16.gmra.mrb[0].mxu0 %v33
    %v565 = vpop.f32.mrb[0].mxu0
    %v566 = vadd.f32 %v489, %v565
    %v567 = vpop.f32.mrb[0].mxu0
    %v568 = vadd.f32 %v493, %v567
    %v569 = vpop.f32.mrb[0].mxu0
    %v570 = vpop.f32.mrb[0].mxu0
    %571 = vdwg.mxu0
    %572 = vmatprep.subr.bf16.mxu0 %v343
    %573 = vmatpush1.bf16.msra.mxu0 %v342
    %574 = vmatprep.subr.bf16.mxu0 %v352
    %575 = vmatpush1.bf16.msra.mxu0 %v351
    %576 = vmatprep.subr.bf16.mxu0 %v361
    %577 = vmatpush1.bf16.msra.mxu0 %v360
    %578 = vmatprep.subr.bf16.mxu0 %v370
    %579 = vmatpush1.bf16.msra.mxu0 %v369
    %580 = vmatprep.subr.bf16.mxu0 %v379
    %581 = vmatpush1.bf16.msra.mxu0 %v378
    %582 = vmatprep.subr.bf16.mxu0 %v388
    %583 = vmatpush1.bf16.msra.mxu0 %v387
    %584 = vmatprep.subr.bf16.mxu0 %v397
    %585 = vmatpush1.bf16.msra.mxu0 %v396
    %586 = vmatprep.subr.bf16.mxu0 %v406
    %587 = vmatpush1.bf16.msra.mxu0 %v405
    %588 = vmatprep.subr.bf16.mxu0 0
    %589 = vmatpush1.bf16.msra.mxu0 0
    %590 = vmatprep.subr.bf16.mxu0 0
    %591 = vmatpush1.bf16.msra.mxu0 0
    %592 = vmatprep.subr.bf16.mxu0 0
    %593 = vmatpush1.bf16.msra.mxu0 0
    %594 = vmatprep.subr.bf16.mxu0 0
    %595 = vmatpush1.bf16.msra.mxu0 0
    %596 = vmatprep.subr.bf16.mxu0 0
    %597 = vmatpush1.bf16.msra.mxu0 0
    %598 = vmatprep.subr.bf16.mxu0 0
    %599 = vmatpush1.bf16.msra.mxu0 0
    %600 = vmatprep.subr.bf16.mxu0 0
    %601 = vmatpush1.bf16.msra.mxu0 0
    %602 = vmatprep.subr.bf16.mxu0 0
    %603 = vmatpush1.bf16.msra.mxu0 0
    %604 = vmatprep.mubr.bf16.mxu0 0
    %605 = vmatmul.mubr.bf16.gmra.mrb[0].mxu0 %v33
    %v606 = vpop.f32.mrb[0].mxu0
    %v607 = vadd.f32 %v497, %v606
    %v608 = vpop.f32.mrb[0].mxu0
    %v609 = vadd.f32 %v501, %v608
    %v610 = vpop.f32.mrb[0].mxu0
    %v611 = vpop.f32.mrb[0].mxu0
    %612 = vdwg.mxu0
    %613 = vmatprep.subr.bf16.mxu0 %v345
    %614 = vmatpush1.bf16.msra.mxu0 %v344
    %615 = vmatprep.subr.bf16.mxu0 %v354
    %616 = vmatpush1.bf16.msra.mxu0 %v353
    %617 = vmatprep.subr.bf16.mxu0 %v363
    %618 = vmatpush1.bf16.msra.mxu0 %v362
    %619 = vmatprep.subr.bf16.mxu0 %v372
    %620 = vmatpush1.bf16.msra.mxu0 %v371
    %621 = vmatprep.subr.bf16.mxu0 %v381
    %622 = vmatpush1.bf16.msra.mxu0 %v380
    %623 = vmatprep.subr.bf16.mxu0 %v390
    %624 = vmatpush1.bf16.msra.mxu0 %v389
    %625 = vmatprep.subr.bf16.mxu0 %v399
    %626 = vmatpush1.bf16.msra.mxu0 %v398
    %627 = vmatprep.subr.bf16.mxu0 %v408
    %628 = vmatpush1.bf16.msra.mxu0 %v407
    %629 = vmatprep.subr.bf16.mxu0 0
    %630 = vmatpush1.bf16.msra.mxu0 0
    %631 = vmatprep.subr.bf16.mxu0 0
    %632 = vmatpush1.bf16.msra.mxu0 0
    %633 = vmatprep.subr.bf16.mxu0 0
    %634 = vmatpush1.bf16.msra.mxu0 0
    %635 = vmatprep.subr.bf16.mxu0 0
    %636 = vmatpush1.bf16.msra.mxu0 0
    %637 = vmatprep.subr.bf16.mxu0 0
    %638 = vmatpush1.bf16.msra.mxu0 0
    %639 = vmatprep.subr.bf16.mxu0 0
    %640 = vmatpush1.bf16.msra.mxu0 0
    %641 = vmatprep.subr.bf16.mxu0 0
    %642 = vmatpush1.bf16.msra.mxu0 0
    %643 = vmatprep.subr.bf16.mxu0 0
    %644 = vmatpush1.bf16.msra.mxu0 0
    %645 = vmatprep.mubr.bf16.mxu0 0
    %646 = vmatmul.mubr.bf16.gmra.mrb[0].mxu0 %v33
    %v647 = vpop.f32.mrb[0].mxu0
    %v648 = vadd.f32 %v505, %v647
    %v649 = vpop.f32.mrb[0].mxu0
    %v650 = vadd.f32 %v509, %v649
    %v651 = vpop.f32.mrb[0].mxu0
    %v652 = vpop.f32.mrb[0].mxu0
    %653 = vdwg.mxu0
    %654 = vmatprep.subr.bf16.mxu0 %v347
    %655 = vmatpush1.bf16.msra.mxu0 %v346
    %656 = vmatprep.subr.bf16.mxu0 %v356
    %657 = vmatpush1.bf16.msra.mxu0 %v355
    %658 = vmatprep.subr.bf16.mxu0 %v365
    %659 = vmatpush1.bf16.msra.mxu0 %v364
    %660 = vmatprep.subr.bf16.mxu0 %v374
    %661 = vmatpush1.bf16.msra.mxu0 %v373
    %662 = vmatprep.subr.bf16.mxu0 %v383
    %663 = vmatpush1.bf16.msra.mxu0 %v382
    %664 = vmatprep.subr.bf16.mxu0 %v392
    %665 = vmatpush1.bf16.msra.mxu0 %v391
    %666 = vmatprep.subr.bf16.mxu0 %v401
    %667 = vmatpush1.bf16.msra.mxu0 %v400
    %668 = vmatprep.subr.bf16.mxu0 %v410
    %669 = vmatpush1.bf16.msra.mxu0 %v409
    %670 = vmatprep.subr.bf16.mxu0 0
    %671 = vmatpush1.bf16.msra.mxu0 0
    %672 = vmatprep.subr.bf16.mxu0 0
    %673 = vmatpush1.bf16.msra.mxu0 0
    %674 = vmatprep.subr.bf16.mxu0 0
    %675 = vmatpush1.bf16.msra.mxu0 0
    %676 = vmatprep.subr.bf16.mxu0 0
    %677 = vmatpush1.bf16.msra.mxu0 0
    %678 = vmatprep.subr.bf16.mxu0 0
    %679 = vmatpush1.bf16.msra.mxu0 0
    %680 = vmatprep.subr.bf16.mxu0 0
    %681 = vmatpush1.bf16.msra.mxu0 0
    %682 = vmatprep.subr.bf16.mxu0 0
    %683 = vmatpush1.bf16.msra.mxu0 0
    %684 = vmatprep.subr.bf16.mxu0 0
    %685 = vmatpush1.bf16.msra.mxu0 0
    %686 = vmatprep.mubr.bf16.mxu0 0
    %687 = vmatmul.mubr.bf16.gmra.mrb[0].mxu0 %v33
    %v688 = vpop.f32.mrb[0].mxu0
    %v689 = vadd.f32 %v513, %v688
    %v690 = vpop.f32.mrb[0].mxu0
    %v691 = vadd.f32 %v517, %v690
    %v692 = vpop.f32.mrb[0].mxu0
    %v693 = vpop.f32.mrb[0].mxu0
    %694 = vdwg.mxu0
    %695 = vmatprep.subr.bf16.mxu0 0
    %696 = vmatpush1.bf16.msra.mxu0 %v348
    %697 = vmatprep.subr.bf16.mxu0 0
    %698 = vmatpush1.bf16.msra.mxu0 %v357
    %699 = vmatprep.subr.bf16.mxu0 0
    %700 = vmatpush1.bf16.msra.mxu0 %v366
    %701 = vmatprep.subr.bf16.mxu0 0
    %702 = vmatpush1.bf16.msra.mxu0 %v375
    %703 = vmatprep.subr.bf16.mxu0 0
    %704 = vmatpush1.bf16.msra.mxu0 %v384
    %705 = vmatprep.subr.bf16.mxu0 0
    %706 = vmatpush1.bf16.msra.mxu0 %v393
    %707 = vmatprep.subr.bf16.mxu0 0
    %708 = vmatpush1.bf16.msra.mxu0 %v402
    %709 = vmatprep.subr.bf16.mxu0 0
    %710 = vmatpush1.bf16.msra.mxu0 %v411
    %711 = vmatprep.subr.bf16.mxu0 0
    %712 = vmatpush1.bf16.msra.mxu0 0
    %713 = vmatprep.subr.bf16.mxu0 0
    %714 = vmatpush1.bf16.msra.mxu0 0
    %715 = vmatprep.subr.bf16.mxu0 0
    %716 = vmatpush1.bf16.msra.mxu0 0
    %717 = vmatprep.subr.bf16.mxu0 0
    %718 = vmatpush1.bf16.msra.mxu0 0
    %719 = vmatprep.subr.bf16.mxu0 0
    %720 = vmatpush1.bf16.msra.mxu0 0
    %721 = vmatprep.subr.bf16.mxu0 0
    %722 = vmatpush1.bf16.msra.mxu0 0
    %723 = vmatprep.subr.bf16.mxu0 0
    %724 = vmatpush1.bf16.msra.mxu0 0
    %725 = vmatprep.subr.bf16.mxu0 0
    %726 = vmatpush1.bf16.msra.mxu0 0
    %727 = vmatprep.mubr.bf16.mxu0 0
    %728 = vmatmul.mubr.bf16.gmra.mrb[0].mxu0 %v33
    %v729 = vpop.f32.mrb[0].mxu0
    %v730 = vadd.f32 %v521, %v729
    %v731 = vpop.f32.mrb[0].mxu0
    %v732 = vpop.f32.mrb[0].mxu0
    %v733 = vpop.f32.mrb[0].mxu0
    %734 = vdwg.mxu0
    %v735 = vmax.f32 %v730, 0.0
    %v736 = vlaneseq
    %v737 = vand.u32 %v736, 127
    %vm738 = vcmp.eq.s32.totalorder %v737, 0
    %v739 = vsel %vm738, %v735, -inf
    %vm740 = vcmask 1040384
    %v741 = vsel %vm740, %v739, -inf
    %742 = vmax.xlane.f32.xlu0 %v741
    %v743 = vpop.xlane.xlu0 %742
    %vm744 = vcmp.eq.s32.totalorder %v737, 1
    %v745 = vsel %vm744, %v735, -inf
    %v746 = vsel %vm740, %v745, -inf
    %747 = vmax.xlane.f32.xlu0 %v746
    %v748 = vpop.xlane.xlu0 %747
    %vm749 = vcmp.eq.s32.totalorder %v737, 2
    %v750 = vsel %vm749, %v735, -inf
    %v751 = vsel %vm740, %v750, -inf
    %752 = vmax.xlane.f32.xlu0 %v751
    %v753 = vpop.xlane.xlu0 %752
    %vm754 = vcmp.eq.s32.totalorder %v737, 3
    %v755 = vsel %vm754, %v735, -inf
    %v756 = vsel %vm740, %v755, -inf
    %757 = vmax.xlane.f32.xlu0 %v756
    %v758 = vpop.xlane.xlu0 %757
    %vm759 = vcmp.eq.s32.totalorder %v737, 4
    %v760 = vsel %vm759, %v735, -inf
    %v761 = vsel %vm740, %v760, -inf
    %762 = vmax.xlane.f32.xlu0 %v761
    %v763 = vpop.xlane.xlu0 %762
    %vm764 = vcmp.eq.s32.totalorder %v737, 5
    %v765 = vsel %vm764, %v735, -inf
    %v766 = vsel %vm740, %v765, -inf
    %767 = vmax.xlane.f32.xlu0 %v766
    %v768 = vpop.xlane.xlu0 %767
    %vm769 = vcmp.eq.s32.totalorder %v737, 6
    %v770 = vsel %vm769, %v735, -inf
    %v771 = vsel %vm740, %v770, -inf
    %772 = vmax.xlane.f32.xlu0 %v771
    %v773 = vpop.xlane.xlu0 %772
    %vm774 = vcmp.eq.s32.totalorder %v737, 7
    %v775 = vsel %vm774, %v735, -inf
    %v776 = vsel %vm740, %v775, -inf
    %777 = vmax.xlane.f32.xlu0 %v776
    %v778 = vpop.xlane.xlu0 %777
    %vm779 = vcmp.ge.f32.partialorder %v743, %v748
    %v780 = vmax.f32 %v743, %v748
    %vm781 = vcmp.ge.f32.partialorder %v753, %v758
    %v782 = vmax.f32 %v753, %v758
    %vm783 = vcmp.ge.f32.partialorder %v763, %v768
    %v784 = vmax.f32 %v763, %v768
    %vm785 = vcmp.ge.f32.partialorder %v773, %v778
    %v786 = vmax.f32 %v773, %v778
    %v787 = vmax.f32 %v780, %v782
    %v788 = vsub.f32 %v780, %v787
    %v789 = vmul.f32 %v788, 1.442695
    %v790 = vpow.pop %v789
    %v791 = vsub.f32 %v782, %v787
    %v792 = vmul.f32 %v791, 1.442695
    %v793 = vpow.pop %v792
    %v794 = vadd.f32 %v790, %v793
    %v795 = vrcp.pop %v794
    %v796 = vmul.f32 1.0, %v795
    %v797 = vmul.f32 %v790, %v796
    %v798 = vmul.f32 %v793, %v796
    %v799 = vmax.f32 %v784, %v786
    %v800 = vsub.f32 %v784, %v799
    %v801 = vmul.f32 %v800, 1.442695
    %v802 = vpow.pop %v801
    %v803 = vsub.f32 %v786, %v799
    %v804 = vmul.f32 %v803, 1.442695
    %v805 = vpow.pop %v804
    %v806 = vadd.f32 %v802, %v805
    %v807 = vrcp.pop %v806
    %v808 = vmul.f32 1.0, %v807
    %v809 = vmul.f32 %v802, %v808
    %v810 = vmul.f32 %v805, %v808
    %v811 = vsel %vm779, 1, 0
    %vm812 = vcmp.eq.s32.totalorder %v811, 1
    %v813 = vsel %vm812, %v566, %v568
    %v814 = vmul.f32 %v797, %v813
    %v815 = vsel %vm781, 1, 0
    %vm816 = vcmp.eq.s32.totalorder %v815, 1
    %v817 = vsel %vm816, %v607, %v609
    %v818 = vmul.f32 %v798, %v817
    %v819 = vadd.f32 %v814, %v818
    %v820 = vsel %vm783, 1, 0
    %vm821 = vcmp.eq.s32.totalorder %v820, 1
    %v822 = vsel %vm821, %v648, %v650
    %v823 = vmul.f32 %v809, %v822
    %v824 = vsel %vm785, 1, 0
    %vm825 = vcmp.eq.s32.totalorder %v824, 1
    %v826 = vsel %vm825, %v689, %v691
    %v827 = vmul.f32 %v810, %v826
    %v828 = vadd.f32 %v823, %v827
    %v829 = vadd.f32 %v819, %v828
    %830 = vst [vmem:[#allocation5] sm:$0x1] %v829
    %vm831 = vcmp.ge.f32.partialorder %v780, %v782
    %v832 = vsel %vm831, 0, 1
    %vm833 = vcmp.ge.f32.partialorder %v784, %v786
    %v834 = vsel %vm833, 0, 1
    %v835 = vsel %vm738, %v832, %v834
    %vm836 = vcmask 8192
    %837 = vst.msk [vmem:[%s4] sm:$0x1] %vm836, %v835
    // Predicated region
    $region18: #{gate_network_forward.1} parent=1 // pred_check
      _
    $region19: #{gate_network_forward.1} parent=1 // pred_check_branch
      %839 = sbr.rel (0) target = $region21
    $region20: #{gate_network_forward.1} parent=1 // pred_region
      %s841 = ssub.s32 16, 16
      %842 = vsyncadd [#allocation4], %s841
      %s844 = sshll.u32 [#allocation5], 4
      %s845 = int_to_ptr.vmem [resolvable:$true] %s844
      %847 = dma.vmem_to_hbm [thread:$0]  %s845, 16, %s3, [#allocation4]
    $region21: #{gate_network_forward.1} parent=1 // pred_fallthru
      _
    // Predicated region
    $region22: #{gate_network_forward.1} parent=1 // pred_check
      _
    $region23: #{gate_network_forward.1} parent=1 // pred_check_branch
      %849 = sbr.rel (0) target = $region25
    $region24: #{gate_network_forward.1} parent=1 // pred_region
      _
    $region25: #{gate_network_forward.1} parent=1 // pred_fallthru
      _
    // Predicated region
    $region26: #{gate_network_forward.1} parent=1 // pred_check
      _
    $region27: #{gate_network_forward.1} parent=1 // pred_check_branch
      %851 = sbr.rel (0) target = $region29
    $region28: #{gate_network_forward.1} parent=1 // pred_region
      %852 = dma.done [#allocation4], 16
    $region29: #{gate_network_forward.1} parent=1 // pred_fallthru
      _
    // Predicated region
    $region30: #{gate_network_forward.1} parent=1 // pred_check
      _
    $region31: #{gate_network_forward.1} parent=1 // pred_check_branch
      %854 = sbr.rel (0) target = $region33
    $region32: #{gate_network_forward.1} parent=1 // pred_region
      _
    $region33: #{gate_network_forward.1} parent=1 // pred_fallthru
      _
    %855 = vsyncpa [#allocation3], 1
    %856 = vsyncpa [#allocation4], 1

</llo_original>
